<compile_context>
chip_gen: v6e
topology: v6e:2x2x1
jax: 0.10.0
libtpu: 0.0.40
codegen_flags: <defaults>
</compile_context>

<pallas_src>
import functools

import jax
import jax.numpy as jnp
from jax.experimental import pallas as pl
from jax.experimental.pallas import tpu as pltpu

EPS = 1e-5
LANE = 128


def _round_up(v, m):
    return ((v + m - 1) // m) * m


# --------------------------------------------------------------------------- #
# Kernel 1: point MLP  relu(x @ W' + b')   (BN scale pre-folded into W'), bf16 out
# --------------------------------------------------------------------------- #
def _mlp_kernel(x_ref, w_ref, b_ref, o_ref):
    acc = jnp.dot(x_ref[...], w_ref[...], preferred_element_type=jnp.float32)
    o_ref[...] = jnp.maximum(acc + b_ref[...], 0.0).astype(o_ref.dtype)


def mlp_bn_relu_pallas(x, w_eff, b_eff, tm=1024):
    """relu(x @ w_eff + b_eff). x:[P,Cin] f32, w_eff:[Cin,Coutp]. Returns [P,Coutp] bf16."""
    P, Cin = x.shape
    Coutp = w_eff.shape[1]
    tm = min(tm, _round_up(max(P, 16), 16))
    Pp = _round_up(max(P, 16), tm)
    x_p = jnp.pad(x, ((0, Pp - P), (0, 0))).astype(jnp.bfloat16)
    out = pl.pallas_call(
        _mlp_kernel,
        out_shape=jax.ShapeDtypeStruct((Pp, Coutp), jnp.bfloat16),
        grid=(Pp // tm,),
        in_specs=[
            pl.BlockSpec((tm, Cin), lambda i: (i, 0)),
            pl.BlockSpec((Cin, Coutp), lambda i: (0, 0)),
            pl.BlockSpec((1, Coutp), lambda i: (0, 0)),
        ],
        out_specs=pl.BlockSpec((tm, Coutp), lambda i: (i, 0)),
        compiler_params=pltpu.CompilerParams(dimension_semantics=("parallel",)),
    )(x_p, w_eff.astype(jnp.bfloat16), b_eff.reshape(1, Coutp).astype(jnp.float32))
    return out[:P]


# --------------------------------------------------------------------------- #
# Kernel 2: fused  Conv3d(bias=False)+BN+ReLU  +  residual add of per-voxel point means
# One grid step = one output z-plane of one batch element (rows = Ho*Wo flat voxels).
# The k input z-planes arrive as k separate auto-pipelined streams of the padded grid.
# --------------------------------------------------------------------------- #
def _conv_bn_relu_add_kernel(*refs, k, stride, Ho, Wo, Cin, k_real):
    plane_refs = refs[:k]                           # k x [Hp, Wp, Cin] bf16 (z, z+1, ..., z+k-1)
    w_ref, b_ref, mean_ref, o_ref, col_ref = refs[k:]
    rows = Ho * Wo
    kp = col_ref.shape[1]

    # zero the K-padding columns of the im2col scratch (their weights are zero, but the
    # scratch is uninitialized VMEM -> NaN * 0 hazard); cheap: rows x (kp - k_real) bf16.
    if kp > k_real:
        col_ref[:, k_real:] = jnp.zeros((rows, kp - k_real), col_ref.dtype)

    # ---- in-VMEM im2col: write each of the k^3 tap patches once into the bf16 scratch ----
    for kz in range(k):
        pz = plane_refs[kz]
        for ky in range(k):
            for kx in range(k):
                if stride == 1:
                    patch = pz[ky:ky + Ho, kx:kx + Wo, :]
                else:
                    patch = pz[pl.ds(ky, Ho, stride), pl.ds(kx, Wo, stride), :]
                tap = (kz * k + ky) * k + kx
                # (Ho, Wo, Cin) -> (rows, Cin): lane dim (Cin) unchanged, leading dims merge
                # (a free relabel when Wo is a multiple of the bf16 sublane tile).
                col_ref[:, tap * Cin:(tap + 1) * Cin] = patch.reshape(rows, Cin)

    # ---- single MXU dot (K = k^3*Cin padded to 128) + folded BN + ReLU ----
    conv = jnp.dot(col_ref[...], w_ref[...], preferred_element_type=jnp.float32)
    conv = jnp.maximum(conv + b_ref[...], 0.0)

    # ---- + point_to_voxel: pre-reduced per-voxel point means (same tiling as the output) ----
    o_ref[...] = (conv + mean_ref[...].astype(jnp.float32)).astype(o_ref.dtype)


# --------------------------------------------------------------------------- #
# Full block forward (Pallas)
# --------------------------------------------------------------------------- #
def new_spv_conv_block(voxel_feats, point_coords, params, k=3, stride=1, padding=1):
    N, D, H, W, Cin = voxel_feats.shape
    Cout = params["conv_w"].shape[-1]
    Coutp = _round_up(Cout, LANE)                    # lane-dense channel padding

    Do = (D + 2 * padding - k) // stride + 1
    Ho = (H + 2 * padding - k) // stride + 1
    Wo = (W + 2 * padding - k) // stride + 1
    rows = Ho * Wo
    assert rows % 8 == 0, "Ho*Wo must be a multiple of the sublane tile (8)"
    V = N * Do * rows
    k_real = k * k * k * Cin
    Kp = _round_up(k_real, LANE)                     # MXU-friendly contraction dim

    # ---- fold BN (inference) into weights / bias; pad channels / K ----
    mlp_s = params["mlp_bn_gamma"] / jnp.sqrt(params["mlp_bn_var"] + EPS)
    mlp_w_eff = jnp.zeros((Cin, Coutp), jnp.float32).at[:, :Cout].set(
        params["mlp_w"] * mlp_s[None, :])
    mlp_b_eff = jnp.zeros((Coutp,), jnp.float32).at[:Cout].set(
        (params["mlp_b"] - params["mlp_bn_mean"]) * mlp_s + params["mlp_bn_beta"])

    conv_s = params["conv_bn_gamma"] / jnp.sqrt(params["conv_bn_var"] + EPS)
    w_conv = (params["conv_w"] * conv_s).reshape(k_real, Cout)
    w_conv_p = jnp.zeros((Kp, Coutp), jnp.float32).at[:k_real, :Cout].set(
        w_conv).astype(jnp.bfloat16)
    b_conv_p = jnp.zeros((1, Coutp), jnp.float32).at[0, :Cout].set(
        params["conv_bn_beta"] - params["conv_bn_mean"] * conv_s)

    # ---- voxel_to_point: nearest-voxel gather (plain-JAX glue) + Pallas MLP ----
    bi = point_coords[:, 0]
    z = point_coords[:, 1]
    y = point_coords[:, 2]
    x = point_coords[:, 3]
    p_feat = voxel_feats[bi, z, y, x]                               # [P, Cin] f32
    p_out = mlp_bn_relu_pallas(p_feat, mlp_w_eff, mlp_b_eff)        # [P, Coutp] bf16

    # ---- point_to_voxel: pre-reduce per-voxel point means on the wrapper (no in-kernel
    #      serial scatter, no SMEM index table, no whole-p_out VMEM residency) ----
    zo = jnp.clip(z // stride, 0, Do - 1)
    yo = jnp.clip(y // stride, 0, Ho - 1)
    xo = jnp.clip(x // stride, 0, Wo - 1)
    vox_idx = ((bi * Do + zo) * Ho + yo) * Wo + xo                  # flat output-voxel per point
    sums = jax.ops.segment_sum(p_out.astype(jnp.float32), vox_idx, num_segments=V)
    cnts = jax.ops.segment_sum(jnp.ones((p_out.shape[0], 1), jnp.float32), vox_idx,
                               num_segments=V)
    pmean = (sums / jnp.maximum(cnts, 1.0)).astype(jnp.bfloat16)    # [V, Coutp] bf16

    # ---- padded voxel grid, bf16; read directly via k overlapping z-plane streams ----
    xp = jnp.pad(voxel_feats.astype(jnp.bfloat16),
                 ((0, 0), (padding, padding), (padding, padding), (padding, padding), (0, 0)))
    Hp, Wp = xp.shape[2], xp.shape[3]

    def plane_spec(j):
        # one input z-plane at element offset zb*stride + j (block size 1 along z, squeezed)
        return pl.BlockSpec((None, None, Hp, Wp, Cin),
                            lambda n, zb, j=j: (n, zb * stride + j, 0, 0, 0))

    kernel = functools.partial(_conv_bn_relu_add_kernel, k=k, stride=stride,
                               Ho=Ho, Wo=Wo, Cin=Cin, k_real=k_real)
    out_flat = pl.pallas_call(
        kernel,
        out_shape=jax.ShapeDtypeStruct((V, Coutp), jnp.float32),
        grid=(N, Do),
        in_specs=[plane_spec(j) for j in range(k)] + [
            pl.BlockSpec((Kp, Coutp), lambda n, zb: (0, 0)),        # folded conv weights
            pl.BlockSpec((1, Coutp), lambda n, zb: (0, 0)),         # folded conv bias
            pl.BlockSpec((rows, Coutp), lambda n, zb: (n * Do + zb, 0)),   # point means
        ],
        out_specs=pl.BlockSpec((rows, Coutp), lambda n, zb: (n * Do + zb, 0)),
        scratch_shapes=[pltpu.VMEM((rows, Kp), jnp.bfloat16)],      # im2col scratch
        compiler_params=pltpu.CompilerParams(
            dimension_semantics=("parallel", "parallel"),
            vmem_limit_bytes=48 * 1024 * 1024),
    )(*([xp] * k), w_conv_p, b_conv_p, pmean)

    return out_flat.reshape(N, Do, Ho, Wo, Coutp)[..., :Cout]


# --------------------------------------------------------------------------- #
# Plain-JAX float32 reference (verification only)
# --------------------------------------------------------------------------- #
def _im2col_3d(xv, k, stride, padding):
    N, D, H, W, C = xv.shape
    xp = jnp.pad(xv, ((0, 0), (padding, padding), (padding, padding), (padding, padding), (0, 0)))
    Do = (D + 2 * padding - k) // stride + 1
    Ho = (H + 2 * padding - k) // stride + 1
    Wo = (W + 2 * padding - k) // stride + 1
    cols = []
    for kz in range(k):
        for ky in range(k):
            for kx in range(k):
                cols.append(xp[:, kz:kz + Do * stride:stride,
                               ky:ky + Ho * stride:stride,
                               kx:kx + Wo * stride:stride, :])
    col = jnp.stack(cols, axis=4)
    return col.reshape(N * Do * Ho * Wo, k * k * k * C), (N, Do, Ho, Wo)


def new_spv_conv_block_reference(voxel_feats, point_coords, params, k=3, stride=1, padding=1):
    N, D, H, W, Cin = voxel_feats.shape
    Cout = params["conv_w"].shape[-1]
    Do = (D + 2 * padding - k) // stride + 1
    Ho = (H + 2 * padding - k) // stride + 1
    Wo = (W + 2 * padding - k) // stride + 1

    b = point_coords[:, 0]
    z = point_coords[:, 1]
    y = point_coords[:, 2]
    x = point_coords[:, 3]
    p_feat = voxel_feats[b, z, y, x]

    mlp_s = params["mlp_bn_gamma"] / jnp.sqrt(params["mlp_bn_var"] + EPS)
    p_lin = p_feat @ params["mlp_w"] + params["mlp_b"]
    p_out = jnp.maximum((p_lin - params["mlp_bn_mean"]) * mlp_s + params["mlp_bn_beta"], 0.0)

    col, _ = _im2col_3d(voxel_feats, k, stride, padding)
    conv = col @ params["conv_w"].reshape(k * k * k * Cin, Cout)
    conv_s = params["conv_bn_gamma"] / jnp.sqrt(params["conv_bn_var"] + EPS)
    conv = jnp.maximum((conv - params["conv_bn_mean"]) * conv_s + params["conv_bn_beta"], 0.0)

    zo = jnp.clip(z // stride, 0, Do - 1)
    yo = jnp.clip(y // stride, 0, Ho - 1)
    xo = jnp.clip(x // stride, 0, Wo - 1)
    vox_idx = ((b * Do + zo) * Ho + yo) * Wo + xo
    V = N * Do * Ho * Wo
    sums = jax.ops.segment_sum(p_out, vox_idx, num_segments=V)
    cnts = jax.ops.segment_sum(jnp.ones((p_out.shape[0], 1), jnp.float32), vox_idx,
                               num_segments=V)
    out = conv + sums / jnp.maximum(cnts, 1.0)
    return out.reshape(N, Do, Ho, Wo, Cout)


def init_params(key, in_c, out_c, k):
    ks = jax.random.split(key, 12)
    return dict(
        conv_w=jax.random.normal(ks[0], (k, k, k, in_c, out_c), jnp.float32) * 0.1,
        conv_bn_gamma=jax.random.uniform(ks[1], (out_c,), minval=0.5, maxval=1.5),
        conv_bn_beta=jax.random.normal(ks[2], (out_c,)) * 0.1,
        conv_bn_mean=jax.random.normal(ks[3], (out_c,)) * 0.1,
        conv_bn_var=jax.random.uniform(ks[4], (out_c,), minval=0.5, maxval=1.5),
        mlp_w=jax.random.normal(ks[5], (in_c, out_c), jnp.float32) * 0.1,
        mlp_b=jax.random.normal(ks[6], (out_c,)) * 0.1,
        mlp_bn_gamma=jax.random.uniform(ks[7], (out_c,), minval=0.5, maxval=1.5),
        mlp_bn_beta=jax.random.normal(ks[8], (out_c,)) * 0.1,
        mlp_bn_mean=jax.random.normal(ks[9], (out_c,)) * 0.1,
        mlp_bn_var=jax.random.uniform(ks[10], (out_c,), minval=0.5, maxval=1.5),
    )


# --------------------------------------------------------------------------- #
if __name__ == "__main__":
    key = jax.random.PRNGKey(0)
    k_vox, k_pts, k_par = jax.random.split(key, 3)

    N, D, H, W = 2, 8, 16, 16            # Wo = 16 -> bf16 sublane-tile aligned im2col collapse
    Cin, Cout, P = 4, 8, 64
    ksz, stride, padding = 3, 1, 1

    voxel = jax.random.normal(k_vox, (N, D, H, W, Cin), jnp.float32)
    kb, kz, ky, kx = jax.random.split(k_pts, 4)
    coords = jnp.stack(
        [
            jax.random.randint(kb, (P,), 0, N),
            jax.random.randint(kz, (P,), 0, D),
            jax.random.randint(ky, (P,), 0, H),
            jax.random.randint(kx, (P,), 0, W),
        ],
        axis=1,
    )
    params = init_params(k_par, Cin, Cout, ksz)

    out = new_spv_conv_block(voxel, coords, params, ksz, stride, padding)
    out = jax.block_until_ready(out)

    ref = new_spv_conv_block_reference(voxel, coords, params, ksz, stride, padding)
    assert out.shape == (N, D, H, W, Cout), out.shape
    # bf16 matmul / gather operands (f32 accumulation) vs. pure-f32 reference -> loose tolerance.
    max_err = float(jnp.max(jnp.abs(out - ref)))
    assert jnp.allclose(out, ref, atol=5e-2, rtol=5e-2), f"mismatch vs reference, max err {max_err}"

    print("KERNEL_OK")
</pallas_src>

<mosaic_0001>
module attributes {stable_mosaic.version = 11 : i64} {
  func.func @_mlp_kernel(%arg0: i32, %arg1: memref<64x4xbf16, #tpu.memory_space<vmem>>, %arg2: memref<4x128xbf16, #tpu.memory_space<vmem>>, %arg3: memref<1x128xf32, #tpu.memory_space<vmem>>, %arg4: memref<64x128xbf16, #tpu.memory_space<vmem>>) attributes {dimension_semantics = [#tpu.dimension_semantics<parallel>], iteration_bounds = array<i64: 1>, scalar_prefetch = 0 : i64, scratch_operands = 0 : i64, tpu.core_type = #tpu.core_type<tc>, window_params = [{transform_indices = @transform_0, window_bounds = array<i64: 64, 4>}, {pipeline_mode = #tpu.pipeline_mode<synchronous>, transform_indices = @transform_1, window_bounds = array<i64: 4, 128>}, {pipeline_mode = #tpu.pipeline_mode<synchronous>, transform_indices = @transform_2, window_bounds = array<i64: 1, 128>}, {transform_indices = @transform_3, window_bounds = array<i64: 64, 128>}]} {
    %c0 = arith.constant 0 : index
    %c0_0 = arith.constant 0 : index
    %0 = vector.load %arg1[%c0, %c0_0] : memref<64x4xbf16, #tpu.memory_space<vmem>>, vector<64x4xbf16>
    %c0_1 = arith.constant 0 : index
    %c0_2 = arith.constant 0 : index
    %1 = vector.load %arg2[%c0_1, %c0_2] : memref<4x128xbf16, #tpu.memory_space<vmem>>, vector<4x128xbf16>
    %cst = arith.constant dense<0.000000e+00> : vector<64x128xf32>
    %2 = tpu.matmul %0, %1, %cst {dimension_numbers = #tpu.dot_dimension_numbers<[1], [0], [0], [1], [0, 0, 1, 1], [], []>} : vector<64x4xbf16>, vector<4x128xbf16>, vector<64x128xf32> -> vector<64x128xf32>
    %c0_3 = arith.constant 0 : index
    %c0_4 = arith.constant 0 : index
    %3 = vector.load %arg3[%c0_3, %c0_4] : memref<1x128xf32, #tpu.memory_space<vmem>>, vector<1x128xf32>
    %4 = vector.broadcast %3 : vector<1x128xf32> to vector<64x128xf32>
    %5 = arith.addf %2, %4 : vector<64x128xf32>
    %cst_5 = arith.constant 0.000000e+00 : f32
    %6 = vector.broadcast %cst_5 : f32 to vector<64x128xf32>
    %7 = arith.maximumf %5, %6 : vector<64x128xf32>
    %8 = arith.truncf %7 : vector<64x128xf32> to vector<64x128xbf16>
    %c0_6 = arith.constant 0 : index
    %c0_7 = arith.constant 0 : index
    %9 = vector.load %arg4[%c0_6, %c0_7] : memref<64x128xbf16, #tpu.memory_space<vmem>>, vector<64x128xbf16>
    tpu.vector_store %arg4[%c0_6, %c0_7], %8 {strides = array<i32>} : memref<64x128xbf16, #tpu.memory_space<vmem>>, vector<64x128xbf16>,
    return
  }
  func.func @transform_0(%arg0: i32) -> (i32, i32) {
    %c0_i32 = arith.constant 0 : i32
    %c0_i32_0 = arith.constant 0 : i32
    return %arg0, %c0_i32 : i32, i32
  }
  func.func @transform_1(%arg0: i32) -> (i32, i32) {
    %c0_i32 = arith.constant 0 : i32
    %c0_i32_0 = arith.constant 0 : i32
    %c0_i32_1 = arith.constant 0 : i32
    return %c0_i32, %c0_i32_0 : i32, i32
  }
  func.func @transform_2(%arg0: i32) -> (i32, i32) {
    %c0_i32 = arith.constant 0 : i32
    %c0_i32_0 = arith.constant 0 : i32
    %c0_i32_1 = arith.constant 0 : i32
    return %c0_i32, %c0_i32_0 : i32, i32
  }
  func.func @transform_3(%arg0: i32) -> (i32, i32) {
    %c0_i32 = arith.constant 0 : i32
    %c0_i32_0 = arith.constant 0 : i32
    return %arg0, %c0_i32 : i32, i32
  }
}

</mosaic_0001>

<llo_original>
// kernel: tpu_custom_call.1
$region0: #{tpu_custom_call.1}
  #allocation0 [shape = 'u32[]', space=smem, size = 0x4, offset = 0x4, fixed_abs, tag = 'smem constant byte address 0x4 - core index']
  #allocation1 [shape = 'u32[144,128]{1,0:T(1,128)}', space=vmem, size = 0x12000, scoped, tag = 'internal scratch']
  %s0 = inlined_call_operand.vmem [shape: bf16[64,4], index: 0, kind: input, shape index: {}]
  %s1 = inlined_call_operand.vmem [shape: bf16[4,128], index: 1, kind: input, shape index: {}]
  %s2 = inlined_call_operand.vmem [shape: f32[1,128], index: 2, kind: input, shape index: {}]
  %s3 = inlined_call_operand.hbm [shape: bf16[64,128], index: 3, kind: output, shape index: {}]
  %s4 = sld [smem:[#allocation0]]
  $region22: #{tpu_custom_call.1} parent=0
    _
  %s6 = ssub.s32 1, %s4
  %s7 = scalar_select 0, %s6, %s4
  $region1: #{tpu_custom_call.1} parent=0
    #allocation2 [shape = 'u8[16384]{0}', space=vmem, size = 0x4000, scoped, tag = 'output window, operand 0, single buffered']
    #allocation3 [shape = 's32[1]{0}', space=sflag, size = 0x4, scoped, tag = 'scoped memory for tpu_custom_call.1']
    %8 = vsyncpa [#allocation3], 0
    // Predicated region
    $region2: #{tpu_custom_call.1} parent=1 // pred_check
      _
    $region3: #{tpu_custom_call.1} parent=1 // pred_check_branch
      %10 = sbr.rel (0) target = $region5
    $region4: #{tpu_custom_call.1} parent=1 // pred_region
      _
    $region5: #{tpu_custom_call.1} parent=1 // pred_fallthru
      _
    // Predicated region
    $region6: #{tpu_custom_call.1} parent=1 // pred_check
      _
    $region7: #{tpu_custom_call.1} parent=1 // pred_check_branch
      %12 = sbr.rel (0) target = $region9
    $region8: #{tpu_custom_call.1} parent=1 // pred_region
      _
    $region9: #{tpu_custom_call.1} parent=1 // pred_fallthru
      _
    // Predicated region
    $region10: #{tpu_custom_call.1} parent=1 // pred_check
      _
    $region11: #{tpu_custom_call.1} parent=1 // pred_check_branch
      %14 = sbr.rel (0) target = $region13
    $region12: #{tpu_custom_call.1} parent=1 // pred_region
      _
    $region13: #{tpu_custom_call.1} parent=1 // pred_fallthru
      _
    %v16 = vld [vmem:[%s0] sm:$0xf]
    %v17 = vld [vmem:[%s0 + $0x4] sm:$0xf]
    %v18 = vld [vmem:[%s0 + $0x8] sm:$0xf]
    %v19 = vld [vmem:[%s0 + $0xc] sm:$0xf]
    %v20 = vld [vmem:[%s0 + $0x10] sm:$0xf]
    %v21 = vld [vmem:[%s0 + $0x14] sm:$0xf]
    %v22 = vld [vmem:[%s0 + $0x18] sm:$0xf]
    %v23 = vld [vmem:[%s0 + $0x1c] sm:$0xf]
    %v24 = vld [vmem:[%s1] sm:$0x3]
    %v25 = vld [vmem:[%s2] sm:$0x1]
    %v27 = vlaneseq
    %v28 = vshrl.u32 %v27, 7
    %v29 = vsub.s32 0, %v28
    %v30 = vrot.slane %v25, %v29
    %v40 = vunpack.c.l.b16 %v16
    %v41 = vunpack.c.l.b16 %v17
    %v42 = vunpack.c.l.b16 %v18
    %v43 = vunpack.c.l.b16 %v19
    %v44 = vunpack.c.l.b16 %v20
    %v45 = vunpack.c.l.b16 %v21
    %v46 = vunpack.c.l.b16 %v22
    %v47 = vunpack.c.l.b16 %v23
    %v48 = vpack.c.b16 %v41, %v40
    %v49 = vpack.c.b16 %v43, %v42
    %v50 = vpack.c.b16 %v45, %v44
    %v51 = vpack.c.b16 %v47, %v46
    %vm52 = vcmask 31744
    %v54 = vsel %vm52, %v48, 0
    %v57 = vsel %vm52, %v49, 0
    %v60 = vsel %vm52, %v50, 0
    %v63 = vsel %vm52, %v51, 0
    %vm65 = vcmask 1041408
    %v67 = vsel %vm65, %v24, 0
    %69 = vmatprep.subr.bf16.mxu0 0
    %70 = vmatpush1.bf16.msra.mxu0 0
    %71 = vmatprep.subr.bf16.mxu0 0
    %72 = vmatpush1.bf16.msra.mxu0 0
    %73 = vmatprep.subr.bf16.mxu0 0
    %74 = vmatpush1.bf16.msra.mxu0 0
    %75 = vmatprep.subr.bf16.mxu0 0
    %76 = vmatpush1.bf16.msra.mxu0 0
    %77 = vmatprep.subr.bf16.mxu0 0
    %78 = vmatpush1.bf16.msra.mxu0 0
    %79 = vmatprep.subr.bf16.mxu0 0
    %80 = vmatpush1.bf16.msra.mxu0 0
    %81 = vmatprep.subr.bf16.mxu0 0
    %82 = vmatpush1.bf16.msra.mxu0 0
    %83 = vmatprep.subr.bf16.mxu0 0
    %84 = vmatpush1.bf16.msra.mxu0 %v67
    %85 = vmatprep.subr.bf16.mxu0 0
    %86 = vmatpush2.bf16.msra.mxu0 0
    %87 = vmatprep.subr.bf16.mxu0 0
    %88 = vmatpush2.bf16.msra.mxu0 0
    %89 = vmatprep.subr.bf16.mxu0 0
    %90 = vmatpush2.bf16.msra.mxu0 0
    %91 = vmatprep.subr.bf16.mxu0 0
    %92 = vmatpush2.bf16.msra.mxu0 0
    %93 = vmatprep.subr.bf16.mxu0 0
    %94 = vmatpush2.bf16.msra.mxu0 0
    %95 = vmatprep.subr.bf16.mxu0 0
    %96 = vmatpush2.bf16.msra.mxu0 0
    %97 = vmatprep.subr.bf16.mxu0 0
    %98 = vmatpush2.bf16.msra.mxu0 0
    %99 = vmatprep.subr.bf16.mxu0 0
    %100 = vmatpush2.bf16.msra.mxu0 0
    %101 = vmatprep.mubr.bf16.mxu0 0
    %102 = vmatmul.mubr.bf16.gmra.mxu0 %v54
    %v103 = vpop.f32.mrf.mxu0
    %v104 = vadd.f32 %v30, %v103
    %v105 = vpop.f32.mrf.mxu0
    %v106 = vpop.f32.mrf.mxu0
    %v107 = vadd.f32 %v30, %v106
    %v108 = vpop.f32.mrf.mxu0
    %109 = vmatprep.mubr.bf16.mxu0 0
    %110 = vmatmul.mubr.bf16.gmra.mxu0 %v57
    %v111 = vpop.f32.mrf.mxu0
    %v112 = vadd.f32 %v30, %v111
    %v113 = vpop.f32.mrf.mxu0
    %v114 = vpop.f32.mrf.mxu0
    %v115 = vadd.f32 %v30, %v114
    %v116 = vpop.f32.mrf.mxu0
    %117 = vmatprep.mubr.bf16.mxu0 0
    %118 = vmatmul.mubr.bf16.gmra.mxu0 %v60
    %v119 = vpop.f32.mrf.mxu0
    %v120 = vadd.f32 %v30, %v119
    %v121 = vpop.f32.mrf.mxu0
    %v122 = vpop.f32.mrf.mxu0
    %v123 = vadd.f32 %v30, %v122
    %v124 = vpop.f32.mrf.mxu0
    %125 = vmatprep.mubr.bf16.mxu0 0
    %126 = vmatmul.mubr.bf16.gmra.mxu0 %v63
    %v127 = vpop.f32.mrf.mxu0
    %v128 = vadd.f32 %v30, %v127
    %v129 = vpop.f32.mrf.mxu0
    %v130 = vpop.f32.mrf.mxu0
    %v131 = vadd.f32 %v30, %v130
    %v132 = vpop.f32.mrf.mxu0
    %133 = vdwg.mxu0
    %v134 = vmax.f32 %v104, 0.0
    %v135 = vmax.f32 %v107, 0.0
    %v136 = vmax.f32 %v112, 0.0
    %v137 = vmax.f32 %v115, 0.0
    %v138 = vmax.f32 %v120, 0.0
    %v139 = vmax.f32 %v123, 0.0
    %v140 = vmax.f32 %v128, 0.0
    %v141 = vmax.f32 %v131, 0.0
    %v142 = vpack.c.bf16 %v135, %v134
    %v143 = vpack.c.bf16 %v137, %v136
    %v144 = vpack.c.bf16 %v139, %v138
    %v145 = vpack.c.bf16 %v141, %v140
    %v150 = vunpack.c.l.b16 %v142
    %v151 = vunpack.c.h.b16 %v142
    %v152 = vunpack.c.l.b16 %v143
    %v153 = vunpack.c.h.b16 %v143
    %v154 = vunpack.c.l.b16 %v144
    %v155 = vunpack.c.h.b16 %v144
    %v156 = vunpack.c.l.b16 %v145
    %v157 = vunpack.c.h.b16 %v145
    %v158 = vpack.c.b16 %v150, %v150
    %v159 = vpack.c.b16 %v151, %v151
    %v160 = vpack.c.b16 %v152, %v152
    %v161 = vpack.c.b16 %v153, %v153
    %v162 = vpack.c.b16 %v154, %v154
    %v163 = vpack.c.b16 %v155, %v155
    %v164 = vpack.c.b16 %v156, %v156
    %v165 = vpack.c.b16 %v157, %v157
    %174 = vst [vmem:[#allocation2] sm:$0xf] %v158
    %175 = vst [vmem:[#allocation2 + $0x4] sm:$0xf] %v159
    %176 = vst [vmem:[#allocation2 + $0x8] sm:$0xf] %v160
    %177 = vst [vmem:[#allocation2 + $0xc] sm:$0xf] %v161
    %178 = vst [vmem:[#allocation2 + $0x10] sm:$0xf] %v162
    %179 = vst [vmem:[#allocation2 + $0x14] sm:$0xf] %v163
    %180 = vst [vmem:[#allocation2 + $0x18] sm:$0xf] %v164
    %181 = vst [vmem:[#allocation2 + $0x1c] sm:$0xf] %v165
    // Predicated region
    $region14: #{tpu_custom_call.1} parent=1 // pred_check
      _
    $region15: #{tpu_custom_call.1} parent=1 // pred_check_branch
      %183 = sbr.rel (0) target = $region17
    $region16: #{tpu_custom_call.1} parent=1 // pred_region
      %s185 = ssub.s32 512, 512
      %186 = vsyncadd [#allocation3], %s185
      %s187 = sshll.u32 [#allocation2], 4
      %s188 = int_to_ptr.vmem [resolvable:$true] %s187
      %193 = dma.vmem_to_hbm [thread:$0]  %s188, 512, %s3, [#allocation3], 64, 64, 4
    $region17: #{tpu_custom_call.1} parent=1 // pred_fallthru
      _
    // Predicated region
    $region18: #{tpu_custom_call.1} parent=1 // pred_check
      _
    $region19: #{tpu_custom_call.1} parent=1 // pred_check_branch
      %195 = sbr.rel (0) target = $region21
    $region20: #{tpu_custom_call.1} parent=1 // pred_region
      %196 = dma.done [#allocation3], 512
    $region21: #{tpu_custom_call.1} parent=1 // pred_fallthru
      _
    %197 = vsyncpa [#allocation3], 1

</llo_original>
